<compile_context>
chip_gen: v5e
topology: v5e:2x2
jax: 0.10.0
libtpu: 0.0.40
codegen_flags: <defaults>
</compile_context>

<pallas_src>
import functools

import jax
import jax.numpy as jnp
from jax.experimental import pallas as pl
from jax.experimental.pallas import tpu as pltpu


def _round_up(x, m):
    return ((x + m - 1) // m) * m


def _cdiv(a, b):
    return -(-a // b)


def _sublane_align(dtype):
    # 8 rows for 4-byte dtypes, 16 for bf16/f16, 32 for int8/fp8.
    return max(8, 32 // jnp.dtype(dtype).itemsize)


@functools.lru_cache(maxsize=None)
def _vmem_limit_bytes():
    cap = 128 * 1024 * 1024  # v5e/v6e physical VMEM
    try:
        info = pltpu.get_tpu_info()
        cap = int(getattr(info, "vmem_capacity_bytes", cap)) or cap
    except Exception:
        pass
    # ~60% of physical VMEM as the scoped limit (~38 MiB on v7x's 64 MiB,
    # ~77 MiB on v5e/v6e's 128 MiB), capped at 96 MiB.
    return min(int(cap * 0.6), 96 * 1024 * 1024)


def _pick_block_rows(n_rows, per_row_bytes, fixed_bytes, vmem_limit, *,
                     align, row_multiple, max_rows, target_grid_steps=8):
    """Largest row tile whose pipelined buffers + f32 temporaries fit the budget."""
    # Use at most ~half the scoped limit for tiles/temporaries; the rest is
    # headroom for compiler scratch and vreg spill slabs.
    budget = max(vmem_limit // 2 - fixed_bytes, per_row_bytes * align)
    rows = budget // max(per_row_bytes, 1)
    rows = min(rows, max_rows)
    # Keep the grid reasonably deep so DMA pipelining has work to overlap and
    # the "parallel" row axis can be sharded across v7x's two TensorCores.
    rows = min(rows, max(_cdiv(n_rows, target_grid_steps), align))
    # MXU / sublane friendly rounding.
    rows = max(row_multiple, (rows // row_multiple) * row_multiple)
    # Never ask for more rows than the (sublane-padded) array provides.
    rows = min(rows, _round_up(n_rows, align))
    return max(align, (rows // align) * align)


def _normalize(x_ref, gamma_ref, beta_ref, eps):
    """f32 LayerNorm of the current tile (two-pass, biased variance like torch)."""
    x = x_ref[...].astype(jnp.float32)
    mean = jnp.mean(x, axis=-1, keepdims=True)
    centered = x - mean
    var = jnp.mean(centered * centered, axis=-1, keepdims=True)
    inv = jax.lax.rsqrt(var + eps)
    return centered * inv * gamma_ref[...] + beta_ref[...]


def _layernorm_kernel(x_ref, gamma_ref, beta_ref, o_ref, *, eps):
    o_ref[...] = _normalize(x_ref, gamma_ref, beta_ref, eps).astype(o_ref.dtype)


def _prenorm_linear_bias_kernel(x_ref, gamma_ref, beta_ref, w_ref, b_ref, o_ref,
                                *, eps, mxu_dtype):
    normed = _normalize(x_ref, gamma_ref, beta_ref, eps)
    acc = jnp.dot(normed.astype(mxu_dtype), w_ref[...],
                  preferred_element_type=jnp.float32)
    o_ref[...] = (acc + b_ref[...]).astype(o_ref.dtype)


def _prenorm_linear_nobias_kernel(x_ref, gamma_ref, beta_ref, w_ref, o_ref,
                                  *, eps, mxu_dtype):
    normed = _normalize(x_ref, gamma_ref, beta_ref, eps)
    acc = jnp.dot(normed.astype(mxu_dtype), w_ref[...],
                  preferred_element_type=jnp.float32)
    o_ref[...] = acc.astype(o_ref.dtype)


def layernorm_pallas(x, gamma, beta, *, eps=1e-5):
    """LayerNorm over the last dim of x (..., dim). Standalone (un-fused) kernel."""
    orig_shape = x.shape
    dim = orig_shape[-1]
    x2d = x.reshape(-1, dim)
    n_rows = x2d.shape[0]
    out_dtype = x.dtype

    align = _sublane_align(x2d.dtype)
    x_item = x2d.dtype.itemsize
    out_item = jnp.dtype(out_dtype).itemsize
    # Double-buffered x/out tiles + ~3 f32 per-row temporaries (x, centered, normed).
    per_row = dim * (2 * x_item + 2 * out_item + 3 * 4)
    fixed = 2 * 2 * dim * 4  # gamma + beta, f32, double-buffered
    vmem_limit = _vmem_limit_bytes()
    block_rows = _pick_block_rows(n_rows, per_row, fixed, vmem_limit,
                                  align=align, row_multiple=align,
                                  max_rows=1024)
    grid = (pl.cdiv(n_rows, block_rows),)  # ragged last block handled by masking

    gamma2d = gamma.reshape(1, dim).astype(jnp.float32)
    beta2d = beta.reshape(1, dim).astype(jnp.float32)

    out = pl.pallas_call(
        functools.partial(_layernorm_kernel, eps=eps),
        out_shape=jax.ShapeDtypeStruct((n_rows, dim), out_dtype),
        grid_spec=pltpu.PrefetchScalarGridSpec(
            num_scalar_prefetch=0,
            grid=grid,
            in_specs=[
                pl.BlockSpec((block_rows, dim), lambda i: (i, 0)),
                pl.BlockSpec((1, dim), lambda i: (0, 0)),  # gamma
                pl.BlockSpec((1, dim), lambda i: (0, 0)),  # beta
            ],
            out_specs=pl.BlockSpec((block_rows, dim), lambda i: (i, 0)),
        ),
        compiler_params=pltpu.CompilerParams(
            dimension_semantics=("parallel",),
            vmem_limit_bytes=vmem_limit,
        ),
    )(x2d, gamma2d, beta2d)
    return out.reshape(orig_shape)


def prenorm_linear_pallas(x, gamma, beta, w, b=None, *, eps=1e-5,
                          mxu_dtype=jnp.bfloat16):
    """Fused LayerNorm(dim) + Linear(dim -> dim_out) in one Pallas kernel.

    `w` is (dim, dim_out) (transpose of torch nn.Linear.weight). LN statistics
    and the accumulator stay f32; MXU operands are cast to `mxu_dtype` (bf16).
    """
    orig_shape = x.shape
    dim = orig_shape[-1]
    dim_out = w.shape[-1]
    x2d = x.reshape(-1, dim)
    n_rows = x2d.shape[0]
    out_dtype = x.dtype
    has_bias = b is not None
    mxu_dtype = jnp.dtype(mxu_dtype)

    # Stream the weight along N in lane-dense (<=512-wide, 128-multiple) tiles.
    tile_n = dim_out if dim_out <= 512 else 512

    align = _sublane_align(x2d.dtype)
    x_item = x2d.dtype.itemsize
    out_item = jnp.dtype(out_dtype).itemsize
    per_row = (dim * (2 * x_item + 3 * 4 + mxu_dtype.itemsize)
               + tile_n * (2 * out_item + 4))
    fixed = 2 * dim * tile_n * mxu_dtype.itemsize       # double-buffered weight tile
    fixed += (2 * tile_n * 4) if has_bias else 0         # bias
    fixed += 2 * 2 * dim * 4                             # gamma + beta
    vmem_limit = _vmem_limit_bytes()
    block_rows = _pick_block_rows(n_rows, per_row, fixed, vmem_limit,
                                  align=align, row_multiple=max(align, 256),
                                  max_rows=1024)
    grid = (pl.cdiv(n_rows, block_rows), pl.cdiv(dim_out, tile_n))

    gamma2d = gamma.reshape(1, dim).astype(jnp.float32)
    beta2d = beta.reshape(1, dim).astype(jnp.float32)
    w_mxu = w.astype(mxu_dtype)

    in_specs = [
        pl.BlockSpec((block_rows, dim), lambda i, j: (i, 0)),  # x: constant over j
        pl.BlockSpec((1, dim), lambda i, j: (0, 0)),           # gamma
        pl.BlockSpec((1, dim), lambda i, j: (0, 0)),           # beta
        pl.BlockSpec((dim, tile_n), lambda i, j: (0, j)),      # weight streamed over N
    ]
    operands = [x2d, gamma2d, beta2d, w_mxu]
    if has_bias:
        in_specs.append(pl.BlockSpec((1, tile_n), lambda i, j: (0, j)))
        operands.append(b.reshape(1, dim_out).astype(jnp.float32))
        kernel = functools.partial(_prenorm_linear_bias_kernel, eps=eps,
                                   mxu_dtype=mxu_dtype)
    else:
        kernel = functools.partial(_prenorm_linear_nobias_kernel, eps=eps,
                                   mxu_dtype=mxu_dtype)

    out = pl.pallas_call(
        kernel,
        out_shape=jax.ShapeDtypeStruct((n_rows, dim_out), out_dtype),
        grid_spec=pltpu.PrefetchScalarGridSpec(
            num_scalar_prefetch=0,
            grid=grid,
            in_specs=in_specs,
            out_specs=pl.BlockSpec((block_rows, tile_n), lambda i, j: (i, j)),
        ),
        compiler_params=pltpu.CompilerParams(
            dimension_semantics=("parallel", "parallel"),
            vmem_limit_bytes=vmem_limit,
        ),
    )(*operands)
    return out.reshape(orig_shape[:-1] + (dim_out,))


class PreNormPallas:
    """JAX/Pallas equivalent of the PyTorch PreNorm module.

    If `fn` is a Linear (fn_weight [+ fn_bias] supplied), it is fused into the
    kernel; otherwise `fn` runs in plain JAX after the LayerNorm kernel.
    """

    def __init__(self, num_tokens, dim, fn, gamma, beta, *,
                 fn_weight=None, fn_bias=None, eps=1e-5):
        self.num_tokens = num_tokens
        self.dim = dim
        self.fn = fn
        self.gamma = gamma
        self.beta = beta
        self.fn_weight = fn_weight
        self.fn_bias = fn_bias
        self.eps = eps

    def __call__(self, x, **kwargs):
        if self.fn_weight is not None and not kwargs:
            return prenorm_linear_pallas(x, self.gamma, self.beta,
                                         self.fn_weight, self.fn_bias,
                                         eps=self.eps)
        # Generic fallback: LN kernel + arbitrary user fn in plain JAX.
        return self.fn(layernorm_pallas(x, self.gamma, self.beta, eps=self.eps),
                       **kwargs)


if __name__ == "__main__":
    key = jax.random.PRNGKey(0)
    k_x, k_g, k_b, k_w, k_bias, k_x2 = jax.random.split(key, 6)

    batch, num_tokens, dim = 2, 8, 32
    x = jax.random.normal(k_x, (batch, num_tokens, dim), dtype=jnp.float32)

    gamma = 1.0 + 0.1 * jax.random.normal(k_g, (dim,), dtype=jnp.float32)
    beta = 0.1 * jax.random.normal(k_b, (dim,), dtype=jnp.float32)

    # `fn`: deterministic Linear(dim -> dim) with bias — fused into the kernel.
    w = 0.05 * jax.random.normal(k_w, (dim, dim), dtype=jnp.float32)
    bias = 0.02 * jax.random.normal(k_bias, (dim,), dtype=jnp.float32)

    def fn(z):
        return z @ w + bias

    module = PreNormPallas(num_tokens, dim, fn, gamma, beta,
                           fn_weight=w, fn_bias=bias)
    out = jax.block_until_ready(module(x))

    # References (plain JAX, two-pass LayerNorm like torch.nn.LayerNorm).
    mean = jnp.mean(x, axis=-1, keepdims=True)
    var = jnp.mean((x - mean) ** 2, axis=-1, keepdims=True)
    ln_ref = (x - mean) / jnp.sqrt(var + 1e-5) * gamma + beta
    # Matched reference for the fused path: bf16 MXU operands, f32 accumulation.
    ref_fused = jnp.dot(ln_ref.astype(jnp.bfloat16), w.astype(jnp.bfloat16),
                        preferred_element_type=jnp.float32) + bias
    ref_f32 = ln_ref @ w + bias

    assert out.shape == (batch, num_tokens, dim)
    assert jnp.allclose(out, ref_fused, atol=5e-3, rtol=5e-3), "fused PreNorm (bias) mismatch"
    assert jnp.allclose(out, ref_f32, atol=3e-2, rtol=3e-2), "fused PreNorm far from f32 reference"

    # No-bias fused kernel variant.
    out_nb = jax.block_until_ready(prenorm_linear_pallas(x, gamma, beta, w))
    ref_fused_nb = jnp.dot(ln_ref.astype(jnp.bfloat16), w.astype(jnp.bfloat16),
                           preferred_element_type=jnp.float32)
    assert jnp.allclose(out_nb, ref_fused_nb, atol=5e-3, rtol=5e-3), "fused PreNorm (no bias) mismatch"

    # Standalone LayerNorm kernel (generic-fn fallback path).
    normed = jax.block_until_ready(layernorm_pallas(x, gamma, beta))
    assert jnp.allclose(normed, ln_ref, atol=1e-4, rtol=1e-4), "LayerNorm kernel mismatch"

    # Ragged grid (row count not a multiple of the row tile) on the LN kernel.
    x2 = jax.random.normal(k_x2, (3, 7, dim), dtype=jnp.float32)  # 21 rows
    normed2 = jax.block_until_ready(layernorm_pallas(x2, gamma, beta))
    mean2 = jnp.mean(x2, axis=-1, keepdims=True)
    var2 = jnp.mean((x2 - mean2) ** 2, axis=-1, keepdims=True)
    ln2_ref = (x2 - mean2) / jnp.sqrt(var2 + 1e-5) * gamma + beta
    assert jnp.allclose(normed2, ln2_ref, atol=1e-4, rtol=1e-4), "ragged LayerNorm mismatch"

    print("KERNEL_OK")
</pallas_src>

<mosaic_0001>
module attributes {stable_mosaic.version = 11 : i64} {
  func.func @_prenorm_linear_bias_kernel(%arg0: i32, %arg1: i32, %arg2: memref<16x32xf32, #tpu.memory_space<vmem>>, %arg3: memref<1x32xf32, #tpu.memory_space<vmem>>, %arg4: memref<1x32xf32, #tpu.memory_space<vmem>>, %arg5: memref<32x32xbf16, #tpu.memory_space<vmem>>, %arg6: memref<1x32xf32, #tpu.memory_space<vmem>>, %arg7: memref<16x32xf32, #tpu.memory_space<vmem>>) attributes {dimension_semantics = [#tpu.dimension_semantics<parallel>, #tpu.dimension_semantics<parallel>], iteration_bounds = array<i64: 1, 1>, scalar_prefetch = 0 : i64, scratch_operands = 0 : i64, tpu.core_type = #tpu.core_type<tc>, window_params = [{transform_indices = @transform_0, window_bounds = array<i64: 16, 32>}, {pipeline_mode = #tpu.pipeline_mode<synchronous>, transform_indices = @transform_1, window_bounds = array<i64: 1, 32>}, {pipeline_mode = #tpu.pipeline_mode<synchronous>, transform_indices = @transform_2, window_bounds = array<i64: 1, 32>}, {transform_indices = @transform_3, window_bounds = array<i64: 32, 32>}, {transform_indices = @transform_4, window_bounds = array<i64: 1, 32>}, {transform_indices = @transform_5, window_bounds = array<i64: 16, 32>}]} {
    %c0 = arith.constant 0 : index
    %c0_0 = arith.constant 0 : index
    %0 = vector.load %arg2[%c0, %c0_0] : memref<16x32xf32, #tpu.memory_space<vmem>>, vector<16x32xf32>
    %cst = arith.constant dense<0.000000e+00> : vector<16xf32>
    %1 = vector.multi_reduction <add>, %0, %cst [1] : vector<16x32xf32> to vector<16xf32>
    %2 = vector.shape_cast %1 : vector<16xf32> to vector<16x1xf32>
    %cst_1 = arith.constant 3.200000e+01 : f32
    %3 = vector.broadcast %cst_1 : f32 to vector<16x1xf32>
    %4 = arith.divf %2, %3 : vector<16x1xf32>
    %5 = vector.broadcast %4 : vector<16x1xf32> to vector<16x32xf32>
    %6 = arith.subf %0, %5 : vector<16x32xf32>
    %7 = arith.mulf %6, %6 : vector<16x32xf32>
    %cst_2 = arith.constant dense<0.000000e+00> : vector<16xf32>
    %8 = vector.multi_reduction <add>, %7, %cst_2 [1] : vector<16x32xf32> to vector<16xf32>
    %9 = vector.shape_cast %8 : vector<16xf32> to vector<16x1xf32>
    %cst_3 = arith.constant 3.200000e+01 : f32
    %10 = vector.broadcast %cst_3 : f32 to vector<16x1xf32>
    %11 = arith.divf %9, %10 : vector<16x1xf32>
    %cst_4 = arith.constant 9.99999974E-6 : f32
    %12 = vector.broadcast %cst_4 : f32 to vector<16x1xf32>
    %13 = arith.addf %11, %12 : vector<16x1xf32>
    %14 = math.rsqrt %13 : vector<16x1xf32>
    %15 = vector.broadcast %14 : vector<16x1xf32> to vector<16x32xf32>
    %16 = arith.mulf %6, %15 : vector<16x32xf32>
    %c0_5 = arith.constant 0 : index
    %c0_6 = arith.constant 0 : index
    %17 = vector.load %arg3[%c0_5, %c0_6] : memref<1x32xf32, #tpu.memory_space<vmem>>, vector<1x32xf32>
    %18 = vector.broadcast %17 : vector<1x32xf32> to vector<16x32xf32>
    %19 = arith.mulf %16, %18 : vector<16x32xf32>
    %c0_7 = arith.constant 0 : index
    %c0_8 = arith.constant 0 : index
    %20 = vector.load %arg4[%c0_7, %c0_8] : memref<1x32xf32, #tpu.memory_space<vmem>>, vector<1x32xf32>
    %21 = vector.broadcast %20 : vector<1x32xf32> to vector<16x32xf32>
    %22 = arith.addf %19, %21 : vector<16x32xf32>
    %23 = arith.truncf %22 : vector<16x32xf32> to vector<16x32xbf16>
    %c0_9 = arith.constant 0 : index
    %c0_10 = arith.constant 0 : index
    %24 = vector.load %arg5[%c0_9, %c0_10] : memref<32x32xbf16, #tpu.memory_space<vmem>>, vector<32x32xbf16>
    %cst_11 = arith.constant dense<0.000000e+00> : vector<16x32xf32>
    %25 = tpu.matmul %23, %24, %cst_11 {dimension_numbers = #tpu.dot_dimension_numbers<[1], [0], [0], [1], [0, 0, 1, 1], [], []>} : vector<16x32xbf16>, vector<32x32xbf16>, vector<16x32xf32> -> vector<16x32xf32>
    %c0_12 = arith.constant 0 : index
    %c0_13 = arith.constant 0 : index
    %26 = vector.load %arg6[%c0_12, %c0_13] : memref<1x32xf32, #tpu.memory_space<vmem>>, vector<1x32xf32>
    %27 = vector.broadcast %26 : vector<1x32xf32> to vector<16x32xf32>
    %28 = arith.addf %25, %27 : vector<16x32xf32>
    %c0_14 = arith.constant 0 : index
    %c0_15 = arith.constant 0 : index
    %29 = vector.load %arg7[%c0_14, %c0_15] : memref<16x32xf32, #tpu.memory_space<vmem>>, vector<16x32xf32>
    tpu.vector_store %arg7[%c0_14, %c0_15], %28 {strides = array<i32>} : memref<16x32xf32, #tpu.memory_space<vmem>>, vector<16x32xf32>,
    return
  }
  func.func @transform_0(%arg0: i32, %arg1: i32) -> (i32, i32) {
    %c0_i32 = arith.constant 0 : i32
    %c0_i32_0 = arith.constant 0 : i32
    return %arg0, %c0_i32 : i32, i32
  }
  func.func @transform_1(%arg0: i32, %arg1: i32) -> (i32, i32) {
    %c0_i32 = arith.constant 0 : i32
    %c0_i32_0 = arith.constant 0 : i32
    %c0_i32_1 = arith.constant 0 : i32
    return %c0_i32, %c0_i32_0 : i32, i32
  }
  func.func @transform_2(%arg0: i32, %arg1: i32) -> (i32, i32) {
    %c0_i32 = arith.constant 0 : i32
    %c0_i32_0 = arith.constant 0 : i32
    %c0_i32_1 = arith.constant 0 : i32
    return %c0_i32, %c0_i32_0 : i32, i32
  }
  func.func @transform_3(%arg0: i32, %arg1: i32) -> (i32, i32) {
    %c0_i32 = arith.constant 0 : i32
    %c0_i32_0 = arith.constant 0 : i32
    return %c0_i32, %arg1 : i32, i32
  }
  func.func @transform_4(%arg0: i32, %arg1: i32) -> (i32, i32) {
    %c0_i32 = arith.constant 0 : i32
    %c0_i32_0 = arith.constant 0 : i32
    return %c0_i32, %arg1 : i32, i32
  }
  func.func @transform_5(%arg0: i32, %arg1: i32) -> (i32, i32) {
    %c0_i32 = arith.constant 0 : i32
    return %arg0, %arg1 : i32, i32
  }
}

</mosaic_0001>

<llo_original>
// kernel: tpu_custom_call.1
$region0: #{tpu_custom_call.1}
  #allocation0 [shape = 'u32[]', space=smem, size = 0x4, offset = 0x4, fixed_abs, tag = 'smem constant byte address 0x4 - core index']
  #allocation1 [shape = 'u32[72,128]{1,0:T(1,128)}', space=vmem, size = 0x9000, scoped, tag = 'internal scratch']
  %s0 = inlined_call_operand.hbm [shape: f32[16,32], index: 0, kind: input, shape index: {}]
  %s1 = inlined_call_operand.hbm [shape: f32[1,32], index: 1, kind: input, shape index: {}]
  %s2 = inlined_call_operand.vmem [shape: f32[1,32], index: 2, kind: input, shape index: {}]
  %s3 = inlined_call_operand.hbm [shape: bf16[32,32], index: 3, kind: input, shape index: {}]
  %s4 = inlined_call_operand.vmem [shape: f32[1,32], index: 4, kind: input, shape index: {}]
  %s5 = inlined_call_operand.hbm [shape: f32[16,32], index: 5, kind: output, shape index: {}]
  %s6 = sld [smem:[#allocation0]]
  $region42: #{tpu_custom_call.1} parent=0
    _
  %s8 = ssub.s32 1, %s6
  %s9 = scalar_select 0, %s8, %s6
  $region1: #{tpu_custom_call.1} parent=0
    #allocation2 [shape = 'u8[8192]{0}', space=vmem, size = 0x2000, scoped, tag = 'input window, operand 0, single buffered']
    #allocation3 [shape = 's32[1]{0}', space=sflag, size = 0x4, scoped, tag = 'scoped memory for tpu_custom_call.1']
    #allocation4 [shape = 's32[1]{0}', space=sflag, size = 0x4, scoped, tag = 'scoped memory for tpu_custom_call.1']
    #allocation5 [shape = 'u8[512]{0}', space=vmem, size = 0x400, scoped, tag = 'input window, operand 1, single buffered']
    #allocation6 [shape = 's32[1]{0}', space=sflag, size = 0x4, scoped, tag = 'scoped memory for tpu_custom_call.1']
    #allocation7 [shape = 'u8[8192]{0}', space=vmem, size = 0x2000, scoped, tag = 'input window, operand 3, single buffered']
    #allocation8 [shape = 'u8[8192]{0}', space=vmem, size = 0x2000, scoped, tag = 'output window, operand 0, single buffered']
    %10 = vsyncpa [#allocation3], 0
    %11 = vsyncpa [#allocation6], 0
    %12 = vsyncpa [#allocation4], 0
    // Predicated region
    $region2: #{tpu_custom_call.1} parent=1 // pred_check
      _
    $region3: #{tpu_custom_call.1} parent=1 // pred_check_branch
      %14 = sbr.rel (0) target = $region5
    $region4: #{tpu_custom_call.1} parent=1 // pred_region
      %16 = vsyncadd [#allocation3], 0
      %s17 = sshll.u32 %s0, 4
      %s18 = int_to_ptr.hbm [resolvable:$true] %s17
      %s19 = sshll.u32 [#allocation2], 4
      %s20 = int_to_ptr.vmem [resolvable:$true] %s19
      %25 = dma.hbm_to_vmem [thread:$0]  %s18, 256, %s20, [#allocation3], 128, 128, 8
    $region5: #{tpu_custom_call.1} parent=1 // pred_fallthru
      _
    // Predicated region
    $region6: #{tpu_custom_call.1} parent=1 // pred_check
      _
    $region7: #{tpu_custom_call.1} parent=1 // pred_check_branch
      %27 = sbr.rel (0) target = $region9
    $region8: #{tpu_custom_call.1} parent=1 // pred_region
      %29 = vsyncadd [#allocation6], 0
      %s31 = sshll.u32 %s1, 4
      %s32 = int_to_ptr.hbm [resolvable:$true] %s31
      %s33 = sshll.u32 [#allocation5], 4
      %s34 = int_to_ptr.vmem [resolvable:$true] %s33
      %36 = dma.hbm_to_vmem [thread:$0]  %s32, 16, %s34, [#allocation6]
    $region9: #{tpu_custom_call.1} parent=1 // pred_fallthru
      _
    // Predicated region
    $region10: #{tpu_custom_call.1} parent=1 // pred_check
      _
    $region11: #{tpu_custom_call.1} parent=1 // pred_check_branch
      %38 = sbr.rel (0) target = $region13
    $region12: #{tpu_custom_call.1} parent=1 // pred_region
      _
    $region13: #{tpu_custom_call.1} parent=1 // pred_fallthru
      _
    // Predicated region
    $region14: #{tpu_custom_call.1} parent=1 // pred_check
      _
    $region15: #{tpu_custom_call.1} parent=1 // pred_check_branch
      %40 = sbr.rel (0) target = $region17
    $region16: #{tpu_custom_call.1} parent=1 // pred_region
      %42 = vsyncadd [#allocation6], 0
      %s43 = sshll.u32 %s3, 4
      %s44 = int_to_ptr.hbm [resolvable:$true] %s43
      %s45 = sshll.u32 [#allocation7], 4
      %s46 = int_to_ptr.vmem [resolvable:$true] %s45
      %51 = dma.hbm_to_vmem [thread:$0]  %s44, 256, %s46, [#allocation6], 64, 64, 4
    $region17: #{tpu_custom_call.1} parent=1 // pred_fallthru
      _
    // Predicated region
    $region18: #{tpu_custom_call.1} parent=1 // pred_check
      _
    $region19: #{tpu_custom_call.1} parent=1 // pred_check_branch
      %53 = sbr.rel (0) target = $region21
    $region20: #{tpu_custom_call.1} parent=1 // pred_region
      _
    $region21: #{tpu_custom_call.1} parent=1 // pred_fallthru
      _
    // Predicated region
    $region22: #{tpu_custom_call.1} parent=1 // pred_check
      _
    $region23: #{tpu_custom_call.1} parent=1 // pred_check_branch
      %55 = sbr.rel (0) target = $region25
    $region24: #{tpu_custom_call.1} parent=1 // pred_region
      %57 = dma.done [#allocation3], 256
    $region25: #{tpu_custom_call.1} parent=1 // pred_fallthru
      _
    // Predicated region
    $region26: #{tpu_custom_call.1} parent=1 // pred_check
      _
    $region27: #{tpu_custom_call.1} parent=1 // pred_check_branch
      %59 = sbr.rel (0) target = $region29
    $region28: #{tpu_custom_call.1} parent=1 // pred_region
      %61 = dma.done [#allocation6], 16
    $region29: #{tpu_custom_call.1} parent=1 // pred_fallthru
      _
    // Predicated region
    $region30: #{tpu_custom_call.1} parent=1 // pred_check
      _
    $region31: #{tpu_custom_call.1} parent=1 // pred_check_branch
      %63 = sbr.rel (0) target = $region33
    $region32: #{tpu_custom_call.1} parent=1 // pred_region
      %65 = dma.done [#allocation6], 256
    $region33: #{tpu_custom_call.1} parent=1 // pred_fallthru
      _
    %v67 = vld [vmem:[#allocation2] sm:$0xff]
    %v68 = vld [vmem:[#allocation2 + $0x8] sm:$0xff]
    %vm69 = vcmask 261120
    %v70 = vsel %vm69, %v67, 0.0
    %71 = vadd.xlane.f32.xlu0 %v70
    %v72 = vpop.xlane.xlu0 %71
    %v73 = vsel %vm69, %v68, 0.0
    %74 = vadd.xlane.f32.xlu0 %v73
    %v75 = vpop.xlane.xlu0 %74
    %v76 = vrcp.pop 32.0
    %v77 = vmul.f32 32.0, %v76
    %v78 = vsub.f32 1.0, %v77
    %v79 = vmul.f32 %v76, %v78
    %v80 = vadd.f32 %v76, %v79
    %vm81 = vweird.f32 %v76
    %v82 = vsel %vm81, %v76, %v80
    %v83 = vmul.f32 %v72, %v82
    %v84 = vmul.f32 %v75, %v82
    %v85 = vsub.f32 %v67, %v83
    %v86 = vsub.f32 %v68, %v84
    %v87 = vmul.f32 %v85, %v85
    %v88 = vmul.f32 %v86, %v86
    %v89 = vsel %vm69, %v87, 0.0
    %90 = vadd.xlane.f32.xlu0 %v89
    %v91 = vpop.xlane.xlu0 %90
    %v92 = vsel %vm69, %v88, 0.0
    %93 = vadd.xlane.f32.xlu0 %v92
    %v94 = vpop.xlane.xlu0 %93
    %v95 = vmul.f32 %v91, %v82
    %v96 = vmul.f32 %v94, %v82
    %v97 = vadd.f32 %v95, 1e-05
    %v98 = vadd.f32 %v96, 1e-05
    %v99 = vrsqrt.pop %v97
    %v100 = vmul.f32 %v99, %v97
    %v101 = vmul.f32 %v100, %v99
    %v102 = vmul.f32 0.5, %v101
    %v103 = vsub.f32 1.5, %v102
    %v104 = vmul.f32 %v99, %v103
    %vm105 = vweird.f32 %v97
    %vm106 = vweird.f32 %v99
    %vm107 = vmor %vm105, %vm106
    %v108 = vsel %vm107, %v99, %v104
    %v109 = vrsqrt.pop %v98
    %v110 = vmul.f32 %v109, %v98
    %v111 = vmul.f32 %v110, %v109
    %v112 = vmul.f32 0.5, %v111
    %v113 = vsub.f32 1.5, %v112
    %v114 = vmul.f32 %v109, %v113
    %vm115 = vweird.f32 %v98
    %vm116 = vweird.f32 %v109
    %vm117 = vmor %vm115, %vm116
    %v118 = vsel %vm117, %v109, %v114
    %v119 = vmul.f32 %v85, %v108
    %v120 = vmul.f32 %v86, %v118
    %v121 = vld [vmem:[#allocation5] sm:$0x1]
    %v123 = vperm.slane %v121, 0
    %v125 = vmul.f32 %v119, %v123
    %v126 = vmul.f32 %v120, %v123
    %v127 = vld [vmem:[%s2] sm:$0x1]
    %v129 = vperm.slane %v127, 0
    %v131 = vadd.f32 %v125, %v129
    %v132 = vadd.f32 %v126, %v129
    %v133 = vpack.c.bf16 %v132, %v131
    %v134 = vld [vmem:[#allocation7] sm:$0xf]
    %v135 = vld [vmem:[#allocation7 + $0x4] sm:$0xf]
    %v136 = vld [vmem:[#allocation7 + $0x8] sm:$0xf]
    %v137 = vld [vmem:[#allocation7 + $0xc] sm:$0xf]
    %v138 = vld [vmem:[%s4] sm:$0x1]
    %v140 = vperm.slane %v138, 0
    %v146 = vunpack.c.l.b16 %v134
    %v147 = vunpack.c.l.b16 %v135
    %v148 = vunpack.c.l.b16 %v136
    %v149 = vunpack.c.l.b16 %v137
    %v150 = vpack.c.b16 %v147, %v146
    %v151 = vpack.c.b16 %v149, %v148
    %v155 = vsel %vm69, %v133, 0
    %157 = vmatpush.bf16.msra.mxu0 0
    %158 = vmatpush.bf16.msra.mxu0 0
    %159 = vmatpush.bf16.msra.mxu0 0
    %160 = vmatpush.bf16.msra.mxu0 0
    %161 = vmatpush.bf16.msra.mxu0 0
    %162 = vmatpush.bf16.msra.mxu0 0
    %163 = vmatpush.bf16.msra.mxu0 %v151
    %164 = vmatpush.bf16.msra.mxu0 %v150
    %165 = vmatmul.bf16.gmra.mxu0 %v155
    %v166 = vpop.f32.mrf.mxu0
    %v167 = vadd.f32 %v140, %v166
    %v168 = vpop.f32.mrf.mxu0
    %v169 = vadd.f32 %v140, %v168
    %170 = vdwg.mxu0
    %171 = vst.msk [vmem:[#allocation8] sm:$0xff] %vm69, %v167
    %172 = vst.msk [vmem:[#allocation8 + $0x8] sm:$0xff] %vm69, %v169
    // Predicated region
    $region34: #{tpu_custom_call.1} parent=1 // pred_check
      _
    $region35: #{tpu_custom_call.1} parent=1 // pred_check_branch
      %174 = sbr.rel (0) target = $region37
    $region36: #{tpu_custom_call.1} parent=1 // pred_region
      %176 = vsyncadd [#allocation4], 0
      %s177 = sshll.u32 [#allocation8], 4
      %s178 = int_to_ptr.vmem [resolvable:$true] %s177
      %s179 = sshll.u32 %s5, 4
      %s180 = int_to_ptr.hbm [resolvable:$true] %s179
      %185 = dma.vmem_to_hbm [thread:$0]  %s178, 256, %s180, [#allocation4], 128, 128, 8
    $region37: #{tpu_custom_call.1} parent=1 // pred_fallthru
      _
    // Predicated region
    $region38: #{tpu_custom_call.1} parent=1 // pred_check
      _
    $region39: #{tpu_custom_call.1} parent=1 // pred_check_branch
      %187 = sbr.rel (0) target = $region41
    $region40: #{tpu_custom_call.1} parent=1 // pred_region
      %189 = dma.done [#allocation4], 256
    $region41: #{tpu_custom_call.1} parent=1 // pred_fallthru
      _
    %190 = vsyncpa [#allocation3], 1
    %191 = vsyncpa [#allocation6], 1
    %192 = vsyncpa [#allocation4], 1

</llo_original>
